<compile_context>
chip_gen: v6e
topology: v6e:2x2x1
jax: 0.10.0
libtpu: 0.0.40
codegen_flags: <defaults>
</compile_context>

<pallas_src>
import math
from functools import partial

import jax
import jax.numpy as jnp
from jax import lax
from jax.experimental import pallas as pl
from jax.experimental.pallas import tpu as pltpu

LN_EPS = 1e-5  # torch.nn.LayerNorm default


def _pick_row_tile(seq_len):
    """Largest 'nice' divisor of seq_len (multiple of 8, <= 512)."""
    for t in (512, 256, 128, 64, 32, 16, 8):
        if seq_len % t == 0:
            return t
    return seq_len  # odd/small seq: single full-seq block (allowed by Pallas)


def _multitype_embedding_kernel(tok_ids_ref, typ_ids_ref,        # SMEM (scalar prefetch)
                                tok_tab_ref, typ_tab_ref,        # VMEM, resident
                                pe_ref, gamma_ref, beta_ref,     # VMEM tiles
                                out_ref,                         # (TR, H) output tile
                                emb_scratch,                     # (TR, H) f32 scratch
                                *, unroll):
    b = pl.program_id(0)
    j = pl.program_id(1)
    TR, H = pe_ref.shape
    V = tok_tab_ref.shape[0]
    T = typ_tab_ref.shape[0]
    seq_len = pl.num_programs(1) * TR
    base = b * seq_len + j * TR

    # ---- gather: token row + type row per output row (scalar-driven DMA-free
    #      dynamic-slice loads from the VMEM-resident tables) -----------------
    def gather_row(r, carry):
        tid = jnp.clip(tok_ids_ref[base + r], 0, V - 1)
        sid = jnp.clip(typ_ids_ref[base + r], 0, T - 1)
        emb_scratch[pl.ds(r, 1), :] = (tok_tab_ref[pl.ds(tid, 1), :] +
                                       typ_tab_ref[pl.ds(sid, 1), :])
        return carry

    lax.fori_loop(0, TR, gather_row, 0, unroll=unroll)

    # ---- vectorized LayerNorm (single-pass variance) + gamma/beta + PE ------
    emb = emb_scratch[...]                                   # [TR, H] f32
    mean = jnp.mean(emb, axis=-1, keepdims=True)             # [TR, 1]
    msq = jnp.mean(emb * emb, axis=-1, keepdims=True)        # [TR, 1]
    var = jnp.maximum(msq - mean * mean, 0.0)
    normed = (emb - mean) * lax.rsqrt(var + LN_EPS)
    normed = normed * gamma_ref[...] + beta_ref[...]         # (1,H) broadcasts
    out_ref[...] = normed + pe_ref[...]


def multitype_embedding(tokens, token_type_ids, token_table, type_table,
                        pe_full, ln_gamma, ln_beta, max_len, *,
                        row_tile=None, unroll=8):
    """Forward pass mirroring MultiTypeEmbedding.forward (eval mode)."""
    # glue: truncate to max_len (matches the module's warning path)
    seq_len = tokens.shape[1]
    if seq_len > max_len:
        tokens = tokens[:, :max_len]
        if token_type_ids is not None:
            token_type_ids = token_type_ids[:, :max_len]
        seq_len = max_len

    if token_type_ids is None:
        # Module skips the type-embedding add entirely when ids are None;
        # emulate by adding a zeroed table.
        token_type_ids = jnp.zeros_like(tokens)
        type_table = jnp.zeros_like(type_table)

    B, S = tokens.shape
    V, H = token_table.shape
    T = type_table.shape[0]

    TR = row_tile if row_tile is not None else _pick_row_tile(S)
    assert S % TR == 0, "row_tile must divide seq_len"
    grid = (B, S // TR)

    pe = pe_full[:S, :].astype(jnp.float32)          # [S, H]
    gamma2d = ln_gamma.reshape(1, H).astype(jnp.float32)
    beta2d = ln_beta.reshape(1, H).astype(jnp.float32)

    tok_flat = tokens.reshape(-1).astype(jnp.int32)   # [B*S] -> SMEM
    typ_flat = token_type_ids.reshape(-1).astype(jnp.int32)

    # VMEM budget: double-buffered resident tables, pe/out tiles, scratch.
    vmem_bytes = 4 * (2 * V * H + 2 * T * H          # tables (double-buffered)
                      + 2 * TR * H                   # pe tile
                      + 2 * TR * H                   # out tile
                      + TR * H                       # scratch
                      + 4 * H)                       # gamma / beta
    vmem_limit = int(min(max(vmem_bytes + (4 << 20), 16 << 20), 96 << 20))

    grid_spec = pltpu.PrefetchScalarGridSpec(
        num_scalar_prefetch=2,
        grid=grid,
        in_specs=[
            pl.BlockSpec((V, H), lambda b, j, tok, typ: (0, 0)),    # token table (resident)
            pl.BlockSpec((T, H), lambda b, j, tok, typ: (0, 0)),    # type table (resident)
            pl.BlockSpec((TR, H), lambda b, j, tok, typ: (j, 0)),   # PE tile
            pl.BlockSpec((1, H), lambda b, j, tok, typ: (0, 0)),    # gamma
            pl.BlockSpec((1, H), lambda b, j, tok, typ: (0, 0)),    # beta
        ],
        out_specs=pl.BlockSpec((None, TR, H),
                               lambda b, j, tok, typ: (b, j, 0)),
        scratch_shapes=[pltpu.VMEM((TR, H), jnp.float32)],
    )

    kernel = partial(_multitype_embedding_kernel, unroll=unroll)
    return pl.pallas_call(
        kernel,
        out_shape=jax.ShapeDtypeStruct((B, S, H), jnp.float32),
        grid_spec=grid_spec,
        compiler_params=pltpu.CompilerParams(
            dimension_semantics=("parallel", "parallel"),
            vmem_limit_bytes=vmem_limit),
    )(tok_flat, typ_flat,
      token_table.astype(jnp.float32), type_table.astype(jnp.float32),
      pe, gamma2d, beta2d)


def make_positional_encoding(max_len, hidden_dim):
    position = jnp.arange(max_len, dtype=jnp.float32)[:, None]          # [L,1]
    div_term = jnp.exp(jnp.arange(0, hidden_dim, 2, dtype=jnp.float32) *
                       (-math.log(10000.0) / hidden_dim))               # [H/2]
    pe = jnp.zeros((max_len, hidden_dim), dtype=jnp.float32)
    pe = pe.at[:, 0::2].set(jnp.sin(position * div_term))
    pe = pe.at[:, 1::2].set(jnp.cos(position * div_term))
    return pe


def reference_forward(tokens, types, tok_tab, typ_tab, pe_full, gamma, beta):
    emb = tok_tab[tokens] + typ_tab[types]
    mean = jnp.mean(emb, axis=-1, keepdims=True)
    var = jnp.mean((emb - mean) ** 2, axis=-1, keepdims=True)
    normed = (emb - mean) / jnp.sqrt(var + LN_EPS) * gamma + beta
    return normed + pe_full[: tokens.shape[1]][None, :, :]


def _make_case(key, B, S, H, vocab, num_types, max_len, pad_idx=0):
    k_tok, k_typ, k_ids, k_tids = jax.random.split(key, 4)
    token_table = 0.02 * jax.random.normal(k_tok, (vocab, H), dtype=jnp.float32)
    token_table = token_table.at[pad_idx].set(0.0)
    type_table = 0.02 * jax.random.normal(k_typ, (num_types, H), dtype=jnp.float32)
    ln_gamma = jnp.ones((H,), dtype=jnp.float32)
    ln_beta = jnp.zeros((H,), dtype=jnp.float32)
    pe_full = make_positional_encoding(max_len, H)
    tokens = jax.random.randint(k_ids, (B, S), 0, vocab, dtype=jnp.int32)
    token_type_ids = jax.random.randint(k_tids, (B, S), 0, num_types, dtype=jnp.int32)
    return tokens, token_type_ids, token_table, type_table, pe_full, ln_gamma, ln_beta


if __name__ == "__main__":
    key = jax.random.PRNGKey(0)
    k1, k2 = jax.random.split(key)

    # --- case 1: small shapes consistent with the module --------------------
    B, S, H = 2, 8, 32
    VOCAB, NUM_TYPES, MAX_LEN = 64, 3, 64
    (tokens, tids, tok_tab, typ_tab, pe_full, g, b) = _make_case(
        k1, B, S, H, VOCAB, NUM_TYPES, MAX_LEN)
    out = multitype_embedding(tokens, tids, tok_tab, typ_tab, pe_full, g, b, MAX_LEN)
    out = jax.block_until_ready(out)
    ref = reference_forward(tokens, tids, tok_tab, typ_tab, pe_full, g, b)
    assert out.shape == (B, S, H)
    assert jnp.allclose(out, ref, atol=1e-4, rtol=1e-4)

    # --- case 2: lane-dense H and multiple seq tiles (exercises pipelining) --
    B2, S2, H2 = 2, 64, 128
    V2, T2, L2 = 512, 3, 128
    (tokens2, tids2, tok_tab2, typ_tab2, pe2, g2, b2) = _make_case(
        k2, B2, S2, H2, V2, T2, L2)
    out2 = multitype_embedding(tokens2, tids2, tok_tab2, typ_tab2, pe2, g2, b2,
                               L2, row_tile=16)
    out2 = jax.block_until_ready(out2)
    ref2 = reference_forward(tokens2, tids2, tok_tab2, typ_tab2, pe2, g2, b2)
    assert out2.shape == (B2, S2, H2)
    assert jnp.allclose(out2, ref2, atol=1e-4, rtol=1e-4)

    print("KERNEL_OK")
</pallas_src>

<mosaic_0001>
module attributes {stable_mosaic.version = 11 : i64} {
  func.func @_multitype_embedding_kernel(%arg0: i32, %arg1: i32, %arg2: memref<16xi32, #tpu.memory_space<smem>>, %arg3: memref<16xi32, #tpu.memory_space<smem>>, %arg4: memref<64x32xf32, #tpu.memory_space<vmem>>, %arg5: memref<3x32xf32, #tpu.memory_space<vmem>>, %arg6: memref<8x32xf32, #tpu.memory_space<vmem>>, %arg7: memref<1x32xf32, #tpu.memory_space<vmem>>, %arg8: memref<1x32xf32, #tpu.memory_space<vmem>>, %arg9: memref<1x8x32xf32, #tpu.memory_space<vmem>>, %arg10: memref<8x32xf32, #tpu.memory_space<vmem>>) attributes {dimension_semantics = [#tpu.dimension_semantics<parallel>, #tpu.dimension_semantics<parallel>], iteration_bounds = array<i64: 2, 1>, scalar_prefetch = 2 : i64, scratch_operands = 1 : i64, tpu.core_type = #tpu.core_type<tc>, window_params = [{pipeline_mode = #tpu.pipeline_mode<synchronous>, transform_indices = @transform_0, window_bounds = array<i64: 64, 32>}, {pipeline_mode = #tpu.pipeline_mode<synchronous>, transform_indices = @transform_1, window_bounds = array<i64: 3, 32>}, {transform_indices = @transform_2, window_bounds = array<i64: 8, 32>}, {pipeline_mode = #tpu.pipeline_mode<synchronous>, transform_indices = @transform_3, window_bounds = array<i64: 1, 32>}, {pipeline_mode = #tpu.pipeline_mode<synchronous>, transform_indices = @transform_4, window_bounds = array<i64: 1, 32>}, {transform_indices = @transform_5, window_bounds = array<i64: 1, 8, 32>}]} {
    %c8_i32 = arith.constant 8 : i32
    %0 = arith.muli %arg0, %c8_i32 : i32
    %c8_i32_0 = arith.constant 8 : i32
    %1 = arith.muli %arg1, %c8_i32_0 : i32
    %2 = arith.addi %0, %1 : i32
    %c0_i32 = arith.constant 0 : i32
    %3 = arith.addi %2, %c0_i32 : i32
    %4 = arith.index_cast %3 : i32 to index
    %5 = memref.load %arg2[%4] : memref<16xi32, #tpu.memory_space<smem>>
    %c0_i32_1 = arith.constant 0 : i32
    %c63_i32 = arith.constant 63 : i32
    %6 = arith.maxsi %c0_i32_1, %5 : i32
    %7 = arith.minsi %c63_i32, %6 : i32
    %8 = arith.addi %2, %c0_i32 : i32
    %9 = arith.index_cast %8 : i32 to index
    %10 = memref.load %arg3[%9] : memref<16xi32, #tpu.memory_space<smem>>
    %c0_i32_2 = arith.constant 0 : i32
    %c2_i32 = arith.constant 2 : i32
    %11 = arith.maxsi %c0_i32_2, %10 : i32
    %12 = arith.minsi %c2_i32, %11 : i32
    %13 = arith.index_cast %7 : i32 to index
    %c0 = arith.constant 0 : index
    %14 = vector.load %arg4[%13, %c0] : memref<64x32xf32, #tpu.memory_space<vmem>>, vector<1x32xf32>
    %15 = arith.index_cast %12 : i32 to index
    %c0_3 = arith.constant 0 : index
    %16 = vector.load %arg5[%15, %c0_3] : memref<3x32xf32, #tpu.memory_space<vmem>>, vector<1x32xf32>
    %17 = arith.addf %14, %16 : vector<1x32xf32>
    %18 = arith.index_cast %c0_i32 : i32 to index
    %c0_4 = arith.constant 0 : index
    %19 = vector.load %arg10[%18, %c0_4] : memref<8x32xf32, #tpu.memory_space<vmem>>, vector<1x32xf32>
    tpu.vector_store %arg10[%18, %c0_4], %17 {strides = array<i32>} : memref<8x32xf32, #tpu.memory_space<vmem>>, vector<1x32xf32>,
    %c1_i32 = arith.constant 1 : i32
    %20 = arith.addi %2, %c1_i32 : i32
    %21 = arith.index_cast %20 : i32 to index
    %22 = memref.load %arg2[%21] : memref<16xi32, #tpu.memory_space<smem>>
    %c0_i32_5 = arith.constant 0 : i32
    %c63_i32_6 = arith.constant 63 : i32
    %23 = arith.maxsi %c0_i32_5, %22 : i32
    %24 = arith.minsi %c63_i32_6, %23 : i32
    %25 = arith.addi %2, %c1_i32 : i32
    %26 = arith.index_cast %25 : i32 to index
    %27 = memref.load %arg3[%26] : memref<16xi32, #tpu.memory_space<smem>>
    %c0_i32_7 = arith.constant 0 : i32
    %c2_i32_8 = arith.constant 2 : i32
    %28 = arith.maxsi %c0_i32_7, %27 : i32
    %29 = arith.minsi %c2_i32_8, %28 : i32
    %30 = arith.index_cast %24 : i32 to index
    %c0_9 = arith.constant 0 : index
    %31 = vector.load %arg4[%30, %c0_9] : memref<64x32xf32, #tpu.memory_space<vmem>>, vector<1x32xf32>
    %32 = arith.index_cast %29 : i32 to index
    %c0_10 = arith.constant 0 : index
    %33 = vector.load %arg5[%32, %c0_10] : memref<3x32xf32, #tpu.memory_space<vmem>>, vector<1x32xf32>
    %34 = arith.addf %31, %33 : vector<1x32xf32>
    %35 = arith.index_cast %c1_i32 : i32 to index
    %c0_11 = arith.constant 0 : index
    %36 = vector.load %arg10[%35, %c0_11] : memref<8x32xf32, #tpu.memory_space<vmem>>, vector<1x32xf32>
    tpu.vector_store %arg10[%35, %c0_11], %34 {strides = array<i32>} : memref<8x32xf32, #tpu.memory_space<vmem>>, vector<1x32xf32>,
    %c2_i32_12 = arith.constant 2 : i32
    %37 = arith.addi %2, %c2_i32_12 : i32
    %38 = arith.index_cast %37 : i32 to index
    %39 = memref.load %arg2[%38] : memref<16xi32, #tpu.memory_space<smem>>
    %c0_i32_13 = arith.constant 0 : i32
    %c63_i32_14 = arith.constant 63 : i32
    %40 = arith.maxsi %c0_i32_13, %39 : i32
    %41 = arith.minsi %c63_i32_14, %40 : i32
    %42 = arith.addi %2, %c2_i32_12 : i32
    %43 = arith.index_cast %42 : i32 to index
    %44 = memref.load %arg3[%43] : memref<16xi32, #tpu.memory_space<smem>>
    %c0_i32_15 = arith.constant 0 : i32
    %c2_i32_16 = arith.constant 2 : i32
    %45 = arith.maxsi %c0_i32_15, %44 : i32
    %46 = arith.minsi %c2_i32_16, %45 : i32
    %47 = arith.index_cast %41 : i32 to index
    %c0_17 = arith.constant 0 : index
    %48 = vector.load %arg4[%47, %c0_17] : memref<64x32xf32, #tpu.memory_space<vmem>>, vector<1x32xf32>
    %49 = arith.index_cast %46 : i32 to index
    %c0_18 = arith.constant 0 : index
    %50 = vector.load %arg5[%49, %c0_18] : memref<3x32xf32, #tpu.memory_space<vmem>>, vector<1x32xf32>
    %51 = arith.addf %48, %50 : vector<1x32xf32>
    %52 = arith.index_cast %c2_i32_12 : i32 to index
    %c0_19 = arith.constant 0 : index
    %53 = vector.load %arg10[%52, %c0_19] : memref<8x32xf32, #tpu.memory_space<vmem>>, vector<1x32xf32>
    tpu.vector_store %arg10[%52, %c0_19], %51 {strides = array<i32>} : memref<8x32xf32, #tpu.memory_space<vmem>>, vector<1x32xf32>,
    %c3_i32 = arith.constant 3 : i32
    %54 = arith.addi %2, %c3_i32 : i32
    %55 = arith.index_cast %54 : i32 to index
    %56 = memref.load %arg2[%55] : memref<16xi32, #tpu.memory_space<smem>>
    %c0_i32_20 = arith.constant 0 : i32
    %c63_i32_21 = arith.constant 63 : i32
    %57 = arith.maxsi %c0_i32_20, %56 : i32
    %58 = arith.minsi %c63_i32_21, %57 : i32
    %59 = arith.addi %2, %c3_i32 : i32
    %60 = arith.index_cast %59 : i32 to index
    %61 = memref.load %arg3[%60] : memref<16xi32, #tpu.memory_space<smem>>
    %c0_i32_22 = arith.constant 0 : i32
    %c2_i32_23 = arith.constant 2 : i32
    %62 = arith.maxsi %c0_i32_22, %61 : i32
    %63 = arith.minsi %c2_i32_23, %62 : i32
    %64 = arith.index_cast %58 : i32 to index
    %c0_24 = arith.constant 0 : index
    %65 = vector.load %arg4[%64, %c0_24] : memref<64x32xf32, #tpu.memory_space<vmem>>, vector<1x32xf32>
    %66 = arith.index_cast %63 : i32 to index
    %c0_25 = arith.constant 0 : index
    %67 = vector.load %arg5[%66, %c0_25] : memref<3x32xf32, #tpu.memory_space<vmem>>, vector<1x32xf32>
    %68 = arith.addf %65, %67 : vector<1x32xf32>
    %69 = arith.index_cast %c3_i32 : i32 to index
    %c0_26 = arith.constant 0 : index
    %70 = vector.load %arg10[%69, %c0_26] : memref<8x32xf32, #tpu.memory_space<vmem>>, vector<1x32xf32>
    tpu.vector_store %arg10[%69, %c0_26], %68 {strides = array<i32>} : memref<8x32xf32, #tpu.memory_space<vmem>>, vector<1x32xf32>,
    %c4_i32 = arith.constant 4 : i32
    %71 = arith.addi %2, %c4_i32 : i32
    %72 = arith.index_cast %71 : i32 to index
    %73 = memref.load %arg2[%72] : memref<16xi32, #tpu.memory_space<smem>>
    %c0_i32_27 = arith.constant 0 : i32
    %c63_i32_28 = arith.constant 63 : i32
    %74 = arith.maxsi %c0_i32_27, %73 : i32
    %75 = arith.minsi %c63_i32_28, %74 : i32
    %76 = arith.addi %2, %c4_i32 : i32
    %77 = arith.index_cast %76 : i32 to index
    %78 = memref.load %arg3[%77] : memref<16xi32, #tpu.memory_space<smem>>
    %c0_i32_29 = arith.constant 0 : i32
    %c2_i32_30 = arith.constant 2 : i32
    %79 = arith.maxsi %c0_i32_29, %78 : i32
    %80 = arith.minsi %c2_i32_30, %79 : i32
    %81 = arith.index_cast %75 : i32 to index
    %c0_31 = arith.constant 0 : index
    %82 = vector.load %arg4[%81, %c0_31] : memref<64x32xf32, #tpu.memory_space<vmem>>, vector<1x32xf32>
    %83 = arith.index_cast %80 : i32 to index
    %c0_32 = arith.constant 0 : index
    %84 = vector.load %arg5[%83, %c0_32] : memref<3x32xf32, #tpu.memory_space<vmem>>, vector<1x32xf32>
    %85 = arith.addf %82, %84 : vector<1x32xf32>
    %86 = arith.index_cast %c4_i32 : i32 to index
    %c0_33 = arith.constant 0 : index
    %87 = vector.load %arg10[%86, %c0_33] : memref<8x32xf32, #tpu.memory_space<vmem>>, vector<1x32xf32>
    tpu.vector_store %arg10[%86, %c0_33], %85 {strides = array<i32>} : memref<8x32xf32, #tpu.memory_space<vmem>>, vector<1x32xf32>,
    %c5_i32 = arith.constant 5 : i32
    %88 = arith.addi %2, %c5_i32 : i32
    %89 = arith.index_cast %88 : i32 to index
    %90 = memref.load %arg2[%89] : memref<16xi32, #tpu.memory_space<smem>>
    %c0_i32_34 = arith.constant 0 : i32
    %c63_i32_35 = arith.constant 63 : i32
    %91 = arith.maxsi %c0_i32_34, %90 : i32
    %92 = arith.minsi %c63_i32_35, %91 : i32
    %93 = arith.addi %2, %c5_i32 : i32
    %94 = arith.index_cast %93 : i32 to index
    %95 = memref.load %arg3[%94] : memref<16xi32, #tpu.memory_space<smem>>
    %c0_i32_36 = arith.constant 0 : i32
    %c2_i32_37 = arith.constant 2 : i32
    %96 = arith.maxsi %c0_i32_36, %95 : i32
    %97 = arith.minsi %c2_i32_37, %96 : i32
    %98 = arith.index_cast %92 : i32 to index
    %c0_38 = arith.constant 0 : index
    %99 = vector.load %arg4[%98, %c0_38] : memref<64x32xf32, #tpu.memory_space<vmem>>, vector<1x32xf32>
    %100 = arith.index_cast %97 : i32 to index
    %c0_39 = arith.constant 0 : index
    %101 = vector.load %arg5[%100, %c0_39] : memref<3x32xf32, #tpu.memory_space<vmem>>, vector<1x32xf32>
    %102 = arith.addf %99, %101 : vector<1x32xf32>
    %103 = arith.index_cast %c5_i32 : i32 to index
    %c0_40 = arith.constant 0 : index
    %104 = vector.load %arg10[%103, %c0_40] : memref<8x32xf32, #tpu.memory_space<vmem>>, vector<1x32xf32>
    tpu.vector_store %arg10[%103, %c0_40], %102 {strides = array<i32>} : memref<8x32xf32, #tpu.memory_space<vmem>>, vector<1x32xf32>,
    %c6_i32 = arith.constant 6 : i32
    %105 = arith.addi %2, %c6_i32 : i32
    %106 = arith.index_cast %105 : i32 to index
    %107 = memref.load %arg2[%106] : memref<16xi32, #tpu.memory_space<smem>>
    %c0_i32_41 = arith.constant 0 : i32
    %c63_i32_42 = arith.constant 63 : i32
    %108 = arith.maxsi %c0_i32_41, %107 : i32
    %109 = arith.minsi %c63_i32_42, %108 : i32
    %110 = arith.addi %2, %c6_i32 : i32
    %111 = arith.index_cast %110 : i32 to index
    %112 = memref.load %arg3[%111] : memref<16xi32, #tpu.memory_space<smem>>
    %c0_i32_43 = arith.constant 0 : i32
    %c2_i32_44 = arith.constant 2 : i32
    %113 = arith.maxsi %c0_i32_43, %112 : i32
    %114 = arith.minsi %c2_i32_44, %113 : i32
    %115 = arith.index_cast %109 : i32 to index
    %c0_45 = arith.constant 0 : index
    %116 = vector.load %arg4[%115, %c0_45] : memref<64x32xf32, #tpu.memory_space<vmem>>, vector<1x32xf32>
    %117 = arith.index_cast %114 : i32 to index
    %c0_46 = arith.constant 0 : index
    %118 = vector.load %arg5[%117, %c0_46] : memref<3x32xf32, #tpu.memory_space<vmem>>, vector<1x32xf32>
    %119 = arith.addf %116, %118 : vector<1x32xf32>
    %120 = arith.index_cast %c6_i32 : i32 to index
    %c0_47 = arith.constant 0 : index
    %121 = vector.load %arg10[%120, %c0_47] : memref<8x32xf32, #tpu.memory_space<vmem>>, vector<1x32xf32>
    tpu.vector_store %arg10[%120, %c0_47], %119 {strides = array<i32>} : memref<8x32xf32, #tpu.memory_space<vmem>>, vector<1x32xf32>,
    %c7_i32 = arith.constant 7 : i32
    %122 = arith.addi %2, %c7_i32 : i32
    %123 = arith.index_cast %122 : i32 to index
    %124 = memref.load %arg2[%123] : memref<16xi32, #tpu.memory_space<smem>>
    %c0_i32_48 = arith.constant 0 : i32
    %c63_i32_49 = arith.constant 63 : i32
    %125 = arith.maxsi %c0_i32_48, %124 : i32
    %126 = arith.minsi %c63_i32_49, %125 : i32
    %127 = arith.addi %2, %c7_i32 : i32
    %128 = arith.index_cast %127 : i32 to index
    %129 = memref.load %arg3[%128] : memref<16xi32, #tpu.memory_space<smem>>
    %c0_i32_50 = arith.constant 0 : i32
    %c2_i32_51 = arith.constant 2 : i32
    %130 = arith.maxsi %c0_i32_50, %129 : i32
    %131 = arith.minsi %c2_i32_51, %130 : i32
    %132 = arith.index_cast %126 : i32 to index
    %c0_52 = arith.constant 0 : index
    %133 = vector.load %arg4[%132, %c0_52] : memref<64x32xf32, #tpu.memory_space<vmem>>, vector<1x32xf32>
    %134 = arith.index_cast %131 : i32 to index
    %c0_53 = arith.constant 0 : index
    %135 = vector.load %arg5[%134, %c0_53] : memref<3x32xf32, #tpu.memory_space<vmem>>, vector<1x32xf32>
    %136 = arith.addf %133, %135 : vector<1x32xf32>
    %137 = arith.index_cast %c7_i32 : i32 to index
    %c0_54 = arith.constant 0 : index
    %138 = vector.load %arg10[%137, %c0_54] : memref<8x32xf32, #tpu.memory_space<vmem>>, vector<1x32xf32>
    tpu.vector_store %arg10[%137, %c0_54], %136 {strides = array<i32>} : memref<8x32xf32, #tpu.memory_space<vmem>>, vector<1x32xf32>,
    %c8_i32_55 = arith.constant 8 : i32
    %c0_56 = arith.constant 0 : index
    %c0_57 = arith.constant 0 : index
    %139 = vector.load %arg10[%c0_56, %c0_57] : memref<8x32xf32, #tpu.memory_space<vmem>>, vector<8x32xf32>
    %cst = arith.constant dense<0.000000e+00> : vector<8xf32>
    %140 = vector.multi_reduction <add>, %139, %cst [1] : vector<8x32xf32> to vector<8xf32>
    %141 = vector.shape_cast %140 : vector<8xf32> to vector<8x1xf32>
    %cst_58 = arith.constant 3.200000e+01 : f32
    %142 = vector.broadcast %cst_58 : f32 to vector<8x1xf32>
    %143 = arith.divf %141, %142 : vector<8x1xf32>
    %144 = arith.mulf %139, %139 : vector<8x32xf32>
    %cst_59 = arith.constant dense<0.000000e+00> : vector<8xf32>
    %145 = vector.multi_reduction <add>, %144, %cst_59 [1] : vector<8x32xf32> to vector<8xf32>
    %146 = vector.shape_cast %145 : vector<8xf32> to vector<8x1xf32>
    %cst_60 = arith.constant 3.200000e+01 : f32
    %147 = vector.broadcast %cst_60 : f32 to vector<8x1xf32>
    %148 = arith.divf %146, %147 : vector<8x1xf32>
    %149 = arith.mulf %143, %143 : vector<8x1xf32>
    %150 = arith.subf %148, %149 : vector<8x1xf32>
    %cst_61 = arith.constant 0.000000e+00 : f32
    %151 = vector.broadcast %cst_61 : f32 to vector<8x1xf32>
    %152 = arith.maximumf %150, %151 : vector<8x1xf32>
    %153 = vector.broadcast %143 : vector<8x1xf32> to vector<8x32xf32>
    %154 = arith.subf %139, %153 : vector<8x32xf32>
    %cst_62 = arith.constant 9.99999974E-6 : f32
    %155 = vector.broadcast %cst_62 : f32 to vector<8x1xf32>
    %156 = arith.addf %152, %155 : vector<8x1xf32>
    %157 = math.rsqrt %156 : vector<8x1xf32>
    %158 = vector.broadcast %157 : vector<8x1xf32> to vector<8x32xf32>
    %159 = arith.mulf %154, %158 : vector<8x32xf32>
    %c0_63 = arith.constant 0 : index
    %c0_64 = arith.constant 0 : index
    %160 = vector.load %arg7[%c0_63, %c0_64] : memref<1x32xf32, #tpu.memory_space<vmem>>, vector<1x32xf32>
    %161 = vector.broadcast %160 : vector<1x32xf32> to vector<8x32xf32>
    %162 = arith.mulf %159, %161 : vector<8x32xf32>
    %c0_65 = arith.constant 0 : index
    %c0_66 = arith.constant 0 : index
    %163 = vector.load %arg8[%c0_65, %c0_66] : memref<1x32xf32, #tpu.memory_space<vmem>>, vector<1x32xf32>
    %164 = vector.broadcast %163 : vector<1x32xf32> to vector<8x32xf32>
    %165 = arith.addf %162, %164 : vector<8x32xf32>
    %c0_67 = arith.constant 0 : index
    %c0_68 = arith.constant 0 : index
    %166 = vector.load %arg6[%c0_67, %c0_68] : memref<8x32xf32, #tpu.memory_space<vmem>>, vector<8x32xf32>
    %167 = arith.addf %165, %166 : vector<8x32xf32>
    %c0_69 = arith.constant 0 : index
    %c0_70 = arith.constant 0 : index
    %c0_71 = arith.constant 0 : index
    %168 = vector.load %arg9[%c0_69, %c0_70, %c0_71] : memref<1x8x32xf32, #tpu.memory_space<vmem>>, vector<1x8x32xf32>
    %169 = vector.shape_cast %168 : vector<1x8x32xf32> to vector<8x32xf32>
    %170 = vector.shape_cast %167 : vector<8x32xf32> to vector<1x8x32xf32>
    tpu.vector_store %arg9[%c0_69, %c0_70, %c0_71], %170 {strides = array<i32>} : memref<1x8x32xf32, #tpu.memory_space<vmem>>, vector<1x8x32xf32>,
    return
  }
  func.func @transform_0(%arg0: i32, %arg1: i32, %arg2: memref<16xi32, #tpu.memory_space<smem>>, %arg3: memref<16xi32, #tpu.memory_space<smem>>) -> (i32, i32) {
    %c0_i32 = arith.constant 0 : i32
    %c0_i32_0 = arith.constant 0 : i32
    %c0_i32_1 = arith.constant 0 : i32
    return %c0_i32, %c0_i32_0 : i32, i32
  }
  func.func @transform_1(%arg0: i32, %arg1: i32, %arg2: memref<16xi32, #tpu.memory_space<smem>>, %arg3: memref<16xi32, #tpu.memory_space<smem>>) -> (i32, i32) {
    %c0_i32 = arith.constant 0 : i32
    %c0_i32_0 = arith.constant 0 : i32
    %c0_i32_1 = arith.constant 0 : i32
    return %c0_i32, %c0_i32_0 : i32, i32
  }
  func.func @transform_2(%arg0: i32, %arg1: i32, %arg2: memref<16xi32, #tpu.memory_space<smem>>, %arg3: memref<16xi32, #tpu.memory_space<smem>>) -> (i32, i32) {
    %c0_i32 = arith.constant 0 : i32
    %c0_i32_0 = arith.constant 0 : i32
    return %arg1, %c0_i32 : i32, i32
  }
  func.func @transform_3(%arg0: i32, %arg1: i32, %arg2: memref<16xi32, #tpu.memory_space<smem>>, %arg3: memref<16xi32, #tpu.memory_space<smem>>) -> (i32, i32) {
    %c0_i32 = arith.constant 0 : i32
    %c0_i32_0 = arith.constant 0 : i32
    %c0_i32_1 = arith.constant 0 : i32
    return %c0_i32, %c0_i32_0 : i32, i32
  }
  func.func @transform_4(%arg0: i32, %arg1: i32, %arg2: memref<16xi32, #tpu.memory_space<smem>>, %arg3: memref<16xi32, #tpu.memory_space<smem>>) -> (i32, i32) {
    %c0_i32 = arith.constant 0 : i32
    %c0_i32_0 = arith.constant 0 : i32
    %c0_i32_1 = arith.constant 0 : i32
    return %c0_i32, %c0_i32_0 : i32, i32
  }
  func.func @transform_5(%arg0: i32, %arg1: i32, %arg2: memref<16xi32, #tpu.memory_space<smem>>, %arg3: memref<16xi32, #tpu.memory_space<smem>>) -> (i32, i32, i32) {
    %c0_i32 = arith.constant 0 : i32
    %c0_i32_0 = arith.constant 0 : i32
    return %arg0, %arg1, %c0_i32 : i32, i32, i32
  }
}

</mosaic_0001>

<llo_original>
// kernel: tpu_custom_call.1
$region0: #{tpu_custom_call.1}
  #allocation0 [shape = 'u32[]', space=smem, size = 0x4, offset = 0x4, fixed_abs, tag = 'smem constant byte address 0x4 - core index']
  #allocation1 [shape = 'u32[144,128]{1,0:T(1,128)}', space=vmem, size = 0x12000, scoped, tag = 'internal scratch']
  #allocation2 [shape = 'f32[8,32]{1,0:T(8,128)}', space=vmem, size = 0x1000, scoped, tag = 'scratch operand']
  #allocation3 [shape = 's32[1]{0}', space=sflag, size = 0x4, scoped, tag = 'scoped memory for tpu_custom_call.1']
  #allocation4 [shape = 'u8[512]{0}', space=smem, size = 0x200, scoped, tag = 'prefetched SMEM operand 0']
  #allocation5 [shape = 'u8[512]{0}', space=smem, size = 0x200, scoped, tag = 'prefetched SMEM operand 1']
  %s0 = inlined_call_operand.vmem [shape: s32[16], index: 0, kind: input, shape index: {}]
  %s1 = inlined_call_operand.vmem [shape: s32[16], index: 1, kind: input, shape index: {}]
  %s2 = inlined_call_operand.vmem [shape: f32[64,32], index: 2, kind: input, shape index: {}]
  %s3 = inlined_call_operand.vmem [shape: f32[3,32], index: 3, kind: input, shape index: {}]
  %s4 = inlined_call_operand.vmem [shape: f32[8,32], index: 4, kind: input, shape index: {}]
  %s5 = inlined_call_operand.vmem [shape: f32[1,32], index: 5, kind: input, shape index: {}]
  %s6 = inlined_call_operand.vmem [shape: f32[1,32], index: 6, kind: input, shape index: {}]
  %s7 = inlined_call_operand.hbm [shape: f32[2,8,32], index: 7, kind: output, shape index: {}]
  %s8 = sld [smem:[#allocation0]]
  $region53: #{tpu_custom_call.1} parent=0
    _
  %s10 = ssub.s32 1, %s8
  %s11 = scalar_select 0, %s10, %s8
  %s12 = sshll.u32 %s0, 4
  %s13 = int_to_ptr.vmem [resolvable:$true] %s12
  %15 = dma.vmem_to_smem %s13, 16, [#allocation4], [#allocation3]
  %s16 = sshll.u32 %s1, 4
  %s17 = int_to_ptr.vmem [resolvable:$true] %s16
  %19 = dma.vmem_to_smem %s17, 16, [#allocation5], [#allocation3]
  %20 = dma.done [#allocation3], 32
  %21 = sfence
  $region1: #{tpu_custom_call.1} parent=0
    #allocation6 [shape = 'u8[8192]{0}', space=vmem, size = 0x2000, scoped, tag = 'output window, operand 0']
    #allocation7 [shape = 's32[2]{0}', space=sflag, size = 0x8, scoped, tag = 'scoped memory for tpu_custom_call.1']
    %22 = vsyncpa [#allocation7], 0
    %s23 = scalar_lea.sflag [#allocation7], 1
    %24 = vsyncpa %s23, 0
    loop: start=0, step=1, limit=4
    $region2: #{tpu_custom_call.1} parent=1 // loop_pre_header
      _
    $region3: #{tpu_custom_call.1} parent=1 // loop_header
      %s26 = sphi 0, %s30
      %p27 = scmp.ge.s32.totalorder %s26, 4
      %s33 = sphi 0, %s45
      %s34 = sphi 0, %s41
      %s35 = sphi 0, %s33
      %s36 = sphi 0, %s34
      %s37 = sphi 0, %s35
      %s38 = sphi 0, %s36
      %s46 = sphi 0, %s46
      %s48 = sphi 0, %s46
      %s49 = sphi 0, %s48
      %s63 = sphi 0, %s49
      %s67 = sphi 0, %s67
      %s69 = sphi 0, %s67
      %s70 = sphi 0, %s69
      %s84 = sphi 0, %s70
      %s90 = sphi 0, %s92
      %s93 = sphi 0, %s90
      %s94 = sphi 0, %s93
      %s110 = sphi 0, %s94
      %s114 = sphi 0, %s114
      %s116 = sphi 0, %s114
      %s117 = sphi 0, %s116
      %s131 = sphi 0, %s117
      %s135 = sphi 0, %s135
      %s137 = sphi 0, %s135
      %s138 = sphi 0, %s137
      %s152 = sphi 0, %s138
      %s160 = sphi 0, %s162
      %s163 = sphi 0, %s160
      %s164 = sphi 0, %s163
      %s180 = sphi 0, %s164
    $region4: #{tpu_custom_call.1} parent=1 // loop_header_branch
      %29 = sbr.rel (%p27) target = $region8
    $region5: #{tpu_custom_call.1} parent=1 // loop_body
      %s31 = ssub.s32 %s26, 1
      %s32 = ssub.s32 %s26, 2
      %s39 = sadd.s32 1, %s34
      %p40 = scmp.ge.s32.totalorder %s39, 1
      %s41 = scalar_select %p40, 0, %s39
      %s42 = sadd.s32 1, %s33
      %s43 = scalar_select %p40, %s42, %s33
      %p44 = scmp.ge.s32.totalorder %s43, 2
      %s45 = scalar_select %p44, 0, %s43
      %s47 = sadd.s32 %s46, 1
      %p50 = scmp.eq.s32.totalorder %s26, 1
      %p51 = scmp.ne.s32.totalorder %s46, %s48
      %p52 = scmp.eq.s32.totalorder %s26, 0
      %p53 = por %p51, %p52
      %p54 = scmp.ne.s32.totalorder %s46, %s48
      %p55 = scmp.eq.s32.totalorder %s31, 1
      %p56 = por %p54, %p55
      %p57 = scmp.ne.s32.totalorder %s48, %s49
      %p58 = scmp.eq.s32.totalorder %s31, 0
      %p59 = por %p57, %p58
      %p60 = scmp.ne.s32.totalorder %s48, %s49
      %p61 = scmp.eq.s32.totalorder %s32, 1
      %p62 = por %p60, %p61
      %p64 = scmp.ne.s32.totalorder %s49, %s63
      %p65 = scmp.eq.s32.totalorder %s32, 0
      %p66 = por %p64, %p65
      %s68 = sadd.s32 %s67, 1
      %p71 = scmp.eq.s32.totalorder %s26, 1
      %p72 = scmp.ne.s32.totalorder %s67, %s69
      %p73 = scmp.eq.s32.totalorder %s26, 0
      %p74 = por %p72, %p73
      %p75 = scmp.ne.s32.totalorder %s67, %s69
      %p76 = scmp.eq.s32.totalorder %s31, 1
      %p77 = por %p75, %p76
      %p78 = scmp.ne.s32.totalorder %s69, %s70
      %p79 = scmp.eq.s32.totalorder %s31, 0
      %p80 = por %p78, %p79
      %p81 = scmp.ne.s32.totalorder %s69, %s70
      %p82 = scmp.eq.s32.totalorder %s32, 1
      %p83 = por %p81, %p82
      %p85 = scmp.ne.s32.totalorder %s70, %s84
      %p86 = scmp.eq.s32.totalorder %s32, 0
      %p87 = por %p85, %p86
      %s88 = ssub.s32 %s34, %s41
      %p89 = scmp.eq.s32.totalorder %s88, 0
      %s91 = sadd.s32 %s90, 1
      %s92 = scalar_select %p89, %s90, %s91
      %p95 = pneg %p89
      %p96 = scmp.eq.s32.totalorder %s26, 1
      %p97 = por %p95, %p96
      %p98 = scmp.ne.s32.totalorder %s90, %s93
      %p99 = scmp.eq.s32.totalorder %s26, 0
      %p100 = por %p98, %p99
      %p101 = scmp.ne.s32.totalorder %s90, %s93
      %p102 = scmp.eq.s32.totalorder %s31, 1
      %p103 = por %p101, %p102
      %p104 = scmp.ne.s32.totalorder %s93, %s94
      %p105 = scmp.eq.s32.totalorder %s31, 0
      %p106 = por %p104, %p105
      %p107 = scmp.ne.s32.totalorder %s93, %s94
      %p108 = scmp.eq.s32.totalorder %s32, 1
      %p109 = por %p107, %p108
      %p111 = scmp.ne.s32.totalorder %s94, %s110
      %p112 = scmp.eq.s32.totalorder %s32, 0
      %p113 = por %p111, %p112
      %s115 = sadd.s32 %s114, 1
      %p118 = scmp.eq.s32.totalorder %s26, 1
      %p119 = scmp.ne.s32.totalorder %s114, %s116
      %p120 = scmp.eq.s32.totalorder %s26, 0
      %p121 = por %p119, %p120
      %p122 = scmp.ne.s32.totalorder %s114, %s116
      %p123 = scmp.eq.s32.totalorder %s31, 1
      %p124 = por %p122, %p123
      %p125 = scmp.ne.s32.totalorder %s116, %s117
      %p126 = scmp.eq.s32.totalorder %s31, 0
      %p127 = por %p125, %p126
      %p128 = scmp.ne.s32.totalorder %s116, %s117
      %p129 = scmp.eq.s32.totalorder %s32, 1
      %p130 = por %p128, %p129
      %p132 = scmp.ne.s32.totalorder %s117, %s131
      %p133 = scmp.eq.s32.totalorder %s32, 0
      %p134 = por %p132, %p133
      %s136 = sadd.s32 %s135, 1
      %p139 = scmp.eq.s32.totalorder %s26, 1
      %p140 = scmp.ne.s32.totalorder %s135, %s137
      %p141 = scmp.eq.s32.totalorder %s26, 0
      %p142 = por %p140, %p141
      %p143 = scmp.ne.s32.totalorder %s135, %s137
      %p144 = scmp.eq.s32.totalorder %s31, 1
      %p145 = por %p143, %p144
      %p146 = scmp.ne.s32.totalorder %s137, %s138
      %p147 = scmp.eq.s32.totalorder %s31, 0
      %p148 = por %p146, %p147
      %p149 = scmp.ne.s32.totalorder %s137, %s138
      %p150 = scmp.eq.s32.totalorder %s32, 1
      %p151 = por %p149, %p150
      %p153 = scmp.ne.s32.totalorder %s138, %s152
      %p154 = scmp.eq.s32.totalorder %s32, 0
      %p155 = por %p153, %p154
      %s156 = ssub.s32 %s33, %s45
      %s157 = ssub.s32 %s34, %s41
      %s158 = sor.u32 %s156, %s157
      %p159 = scmp.eq.s32.totalorder %s158, 0
      %s161 = sadd.s32 %s160, 1
      %s162 = scalar_select %p159, %s160, %s161
      %p165 = pneg %p159
      %p166 = scmp.eq.s32.totalorder %s26, 1
      %p167 = por %p165, %p166
      %p168 = scmp.ne.s32.totalorder %s160, %s163
      %p169 = scmp.eq.s32.totalorder %s26, 0
      %p170 = por %p168, %p169
      %p171 = scmp.ne.s32.totalorder %s160, %s163
      %p172 = scmp.eq.s32.totalorder %s31, 1
      %p173 = por %p171, %p172
      %p174 = scmp.ne.s32.totalorder %s163, %s164
      %p175 = scmp.eq.s32.totalorder %s31, 0
      %p176 = por %p174, %p175
      %p177 = scmp.ne.s32.totalorder %s163, %s164
      %p178 = scmp.eq.s32.totalorder %s32, 1
      %p179 = por %p177, %p178
      %p181 = scmp.ne.s32.totalorder %s164, %s180
      %p182 = scmp.eq.s32.totalorder %s32, 0
      %p183 = por %p181, %p182
      %p184 = scmp.le.s32.totalorder 1, %s26
      %p185 = scmp.lt.s32.totalorder %s26, 3
      %p186 = pnand %p184, %p185
      %p187 = pneg %p186
      // Predicated region
      $region9: #{tpu_custom_call.1} parent=5 // pred_check
        _
      $region10: #{tpu_custom_call.1} parent=5 // pred_check_branch
        %189 = sbr.rel (%p186) target = $region12
      $region11: #{tpu_custom_call.1} parent=5 // pred_region
        %s190 = ssub.s32 %s26, 1
        // Predicated region
        $region13: #{tpu_custom_call.1} parent=11 // pred_check
          %p191 = pneg %p59
        $region14: #{tpu_custom_call.1} parent=11 // pred_check_branch
          %193 = sbr.rel (%p191) target = $region16
        $region15: #{tpu_custom_call.1} parent=11 // pred_region
          _
        $region16: #{tpu_custom_call.1} parent=11 // pred_fallthru
          _
        // Predicated region
        $region17: #{tpu_custom_call.1} parent=11 // pred_check
          %p194 = pneg %p80
        $region18: #{tpu_custom_call.1} parent=11 // pred_check_branch
          %196 = sbr.rel (%p194) target = $region20
        $region19: #{tpu_custom_call.1} parent=11 // pred_region
          _
        $region20: #{tpu_custom_call.1} parent=11 // pred_fallthru
          _
        // Predicated region
        $region21: #{tpu_custom_call.1} parent=11 // pred_check
          %p197 = pneg %p106
        $region22: #{tpu_custom_call.1} parent=11 // pred_check_branch
          %199 = sbr.rel (%p197) target = $region24
        $region23: #{tpu_custom_call.1} parent=11 // pred_region
          %p200 = scmp.lt.s32.totalorder %s36, 0
          %s201 = scalar_select %p200, %s36, 0
          %s202 = smul.addr %s201, 8
          %s203 = scalar_lea.vmem %s4, %s202
        $region24: #{tpu_custom_call.1} parent=11 // pred_fallthru
          _
        // Predicated region
        $region25: #{tpu_custom_call.1} parent=11 // pred_check
          %p204 = pneg %p127
        $region26: #{tpu_custom_call.1} parent=11 // pred_check_branch
          %206 = sbr.rel (%p204) target = $region28
        $region27: #{tpu_custom_call.1} parent=11 // pred_region
          _
        $region28: #{tpu_custom_call.1} parent=11 // pred_fallthru
          _
        // Predicated region
        $region29: #{tpu_custom_call.1} parent=11 // pred_check
          %p207 = pneg %p148
        $region30: #{tpu_custom_call.1} parent=11 // pred_check_branch
          %209 = sbr.rel (%p207) target = $region32
        $region31: #{tpu_custom_call.1} parent=11 // pred_region
          _
        $region32: #{tpu_custom_call.1} parent=11 // pred_fallthru
          _
      $region12: #{tpu_custom_call.1} parent=5 // pred_fallthru
        _
      %p210 = scmp.lt.s32.totalorder %s26, 2
      // Predicated region
      $region33: #{tpu_custom_call.1} parent=5 // pred_check
        %p211 = pneg %p210
      $region34: #{tpu_custom_call.1} parent=5 // pred_check_branch
        %213 = sbr.rel (%p211) target = $region36
      $region35: #{tpu_custom_call.1} parent=5 // pred_region
        _
      $region36: #{tpu_custom_call.1} parent=5 // pred_fallthru
        _
      %p214 = scmp.le.s32.totalorder 1, %s26
      %p215 = scmp.lt.s32.totalorder %s26, 3
      %p216 = pnand %p214, %p215
      %p217 = pneg %p216
      // Predicated region
      $region37: #{tpu_custom_call.1} parent=5 // pred_check
        _
      $region38: #{tpu_custom_call.1} parent=5 // pred_check_branch
        %219 = sbr.rel (%p216) target = $region40
      $region39: #{tpu_custom_call.1} parent=5 // pred_region
        %s220 = ssub.s32 %s26, 1
        %p221 = pneg %p59
        %p222 = pneg %p56
        %p223 = pneg %p80
        %p224 = pneg %p77
        %p225 = scmp.lt.s32.totalorder %s36, 0
        %s226 = scalar_select %p225, %s36, 0
        %s227 = smul.addr %s226, 8
        %s228 = scalar_lea.vmem %s4, %s227
        %p229 = pneg %p106
        %p230 = pneg %p103
        %p231 = pneg %p127
        %p232 = pneg %p124
        %p233 = pneg %p148
        %p234 = pneg %p145
        %p235 = pneg %p176
        %p236 = pneg %p173
        %s237 = sand.u32 %s163, 1
        %s238 = scalar_lea.sflag [#allocation7], %s237
        %s239 = sand.u32 %s163, 1
        %s240 = smul.addr %s239, 8
        %s241 = scalar_lea.vmem [#allocation6], %s240
        %p242 = scmp.lt.s32.totalorder %s36, 0
        %s243 = scalar_select %p242, %s36, 0
        %s244 = smul.addr %s243, 8
        %s245 = scalar_lea.vmem %s4, %s244
        %s246 = smul.u32 %s35, 8
        %s247 = smul.u32 %s36, 8
        %s248 = sadd.s32 %s246, %s247
        %s249 = sld [smem:[#allocation4 + %s248]]
        %p250 = scmp.gt.s32.totalorder %s249, 0
        %s251 = scalar_select %p250, %s249, 0
        %p252 = scmp.lt.s32.totalorder %s251, 63
        %s253 = scalar_select %p252, %s251, 63
        %s254 = sld [smem:[#allocation5 + %s248]]
        %p255 = scmp.gt.s32.totalorder %s254, 0
        %s256 = scalar_select %p255, %s254, 0
        %p257 = scmp.lt.s32.totalorder %s256, 2
        %s258 = scalar_select %p257, %s256, 2
        %s259 = scalar_lea.vmem %s2, %s253
        %v260 = vld [vmem:[%s259] sm:$0x1]
        %s261 = scalar_lea.vmem %s3, %s258
        %v262 = vld [vmem:[%s261] sm:$0x1]
        %v263 = vadd.f32 %v260, %v262
        %vm264 = vcmask 253952
        %265 = vst.msk [vmem:[#allocation2] sm:$0x1] %vm264, %v263
        %s266 = sadd.s32 %s248, 1
        %s267 = sld [smem:[#allocation4 + %s266]]
        %p268 = scmp.gt.s32.totalorder %s267, 0
        %s269 = scalar_select %p268, %s267, 0
        %p270 = scmp.lt.s32.totalorder %s269, 63
        %s271 = scalar_select %p270, %s269, 63
        %s272 = sld [smem:[#allocation5 + %s266]]
        %p273 = scmp.gt.s32.totalorder %s272, 0
        %s274 = scalar_select %p273, %s272, 0
        %p275 = scmp.lt.s32.totalorder %s274, 2
        %s276 = scalar_select %p275, %s274, 2
        %s277 = scalar_lea.vmem %s2, %s271
        %v278 = vld [vmem:[%s277] sm:$0x1]
        %s279 = scalar_lea.vmem %s3, %s276
        %v280 = vld [vmem:[%s279] sm:$0x1]
        %v281 = vadd.f32 %v278, %v280
        %282 = vst.msk [vmem:[#allocation2 + $0x1] sm:$0x1] %vm264, %v281
        %s283 = sadd.s32 %s248, 2
        %s284 = sld [smem:[#allocation4 + %s283]]
        %p285 = scmp.gt.s32.totalorder %s284, 0
        %s286 = scalar_select %p285, %s284, 0
        %p287 = scmp.lt.s32.totalorder %s286, 63
        %s288 = scalar_select %p287, %s286, 63
        %s289 = sld [smem:[#allocation5 + %s283]]
        %p290 = scmp.gt.s32.totalorder %s289, 0
        %s291 = scalar_select %p290, %s289, 0
        %p292 = scmp.lt.s32.totalorder %s291, 2
        %s293 = scalar_select %p292, %s291, 2
        %s294 = scalar_lea.vmem %s2, %s288
        %v295 = vld [vmem:[%s294] sm:$0x1]
        %s296 = scalar_lea.vmem %s3, %s293
        %v297 = vld [vmem:[%s296] sm:$0x1]
        %v298 = vadd.f32 %v295, %v297
        %299 = vst.msk [vmem:[#allocation2 + $0x2] sm:$0x1] %vm264, %v298
        %s300 = sadd.s32 %s248, 3
        %s301 = sld [smem:[#allocation4 + %s300]]
        %p302 = scmp.gt.s32.totalorder %s301, 0
        %s303 = scalar_select %p302, %s301, 0
        %p304 = scmp.lt.s32.totalorder %s303, 63
        %s305 = scalar_select %p304, %s303, 63
        %s306 = sld [smem:[#allocation5 + %s300]]
        %p307 = scmp.gt.s32.totalorder %s306, 0
        %s308 = scalar_select %p307, %s306, 0
        %p309 = scmp.lt.s32.totalorder %s308, 2
        %s310 = scalar_select %p309, %s308, 2
        %s311 = scalar_lea.vmem %s2, %s305
        %v312 = vld [vmem:[%s311] sm:$0x1]
        %s313 = scalar_lea.vmem %s3, %s310
        %v314 = vld [vmem:[%s313] sm:$0x1]
        %v315 = vadd.f32 %v312, %v314
        %316 = vst.msk [vmem:[#allocation2 + $0x3] sm:$0x1] %vm264, %v315
        %s317 = sadd.s32 %s248, 4
        %s318 = sld [smem:[#allocation4 + %s317]]
        %p319 = scmp.gt.s32.totalorder %s318, 0
        %s320 = scalar_select %p319, %s318, 0
        %p321 = scmp.lt.s32.totalorder %s320, 63
        %s322 = scalar_select %p321, %s320, 63
        %s323 = sld [smem:[#allocation5 + %s317]]
        %p324 = scmp.gt.s32.totalorder %s323, 0
        %s325 = scalar_select %p324, %s323, 0
        %p326 = scmp.lt.s32.totalorder %s325, 2
        %s327 = scalar_select %p326, %s325, 2
        %s328 = scalar_lea.vmem %s2, %s322
        %v329 = vld [vmem:[%s328] sm:$0x1]
        %s330 = scalar_lea.vmem %s3, %s327
        %v331 = vld [vmem:[%s330] sm:$0x1]
        %v332 = vadd.f32 %v329, %v331
        %333 = vst.msk [vmem:[#allocation2 + $0x4] sm:$0x1] %vm264, %v332
        %s334 = sadd.s32 %s248, 5
        %s335 = sld [smem:[#allocation4 + %s334]]
        %p336 = scmp.gt.s32.totalorder %s335, 0
        %s337 = scalar_select %p336, %s335, 0
        %p338 = scmp.lt.s32.totalorder %s337, 63
        %s339 = scalar_select %p338, %s337, 63
        %s340 = sld [smem:[#allocation5 + %s334]]
        %p341 = scmp.gt.s32.totalorder %s340, 0
        %s342 = scalar_select %p341, %s340, 0
        %p343 = scmp.lt.s32.totalorder %s342, 2
        %s344 = scalar_select %p343, %s342, 2
        %s345 = scalar_lea.vmem %s2, %s339
        %v346 = vld [vmem:[%s345] sm:$0x1]
        %s347 = scalar_lea.vmem %s3, %s344
        %v348 = vld [vmem:[%s347] sm:$0x1]
        %v349 = vadd.f32 %v346, %v348
        %350 = vst.msk [vmem:[#allocation2 + $0x5] sm:$0x1] %vm264, %v349
        %s351 = sadd.s32 %s248, 6
        %s352 = sld [smem:[#allocation4 + %s351]]
        %p353 = scmp.gt.s32.totalorder %s352, 0
        %s354 = scalar_select %p353, %s352, 0
        %p355 = scmp.lt.s32.totalorder %s354, 63
        %s356 = scalar_select %p355, %s354, 63
        %s357 = sld [smem:[#allocation5 + %s351]]
        %p358 = scmp.gt.s32.totalorder %s357, 0
        %s359 = scalar_select %p358, %s357, 0
        %p360 = scmp.lt.s32.totalorder %s359, 2
        %s361 = scalar_select %p360, %s359, 2
        %s362 = scalar_lea.vmem %s2, %s356
        %v363 = vld [vmem:[%s362] sm:$0x1]
        %s364 = scalar_lea.vmem %s3, %s361
        %v365 = vld [vmem:[%s364] sm:$0x1]
        %v366 = vadd.f32 %v363, %v365
        %367 = vst.msk [vmem:[#allocation2 + $0x6] sm:$0x1] %vm264, %v366
        %s368 = sadd.s32 %s248, 7
        %s369 = sld [smem:[#allocation4 + %s368]]
        %p370 = scmp.gt.s32.totalorder %s369, 0
        %s371 = scalar_select %p370, %s369, 0
        %p372 = scmp.lt.s32.totalorder %s371, 63
        %s373 = scalar_select %p372, %s371, 63
        %s374 = sld [smem:[#allocation5 + %s368]]
        %p375 = scmp.gt.s32.totalorder %s374, 0
        %s376 = scalar_select %p375, %s374, 0
        %p377 = scmp.lt.s32.totalorder %s376, 2
        %s378 = scalar_select %p377, %s376, 2
        %s379 = scalar_lea.vmem %s2, %s373
        %v380 = vld [vmem:[%s379] sm:$0x1]
        %s381 = scalar_lea.vmem %s3, %s378
        %v382 = vld [vmem:[%s381] sm:$0x1]
        %v383 = vadd.f32 %v380, %v382
        %384 = vst.msk [vmem:[#allocation2 + $0x7] sm:$0x1] %vm264, %v383
        %v385 = vld [vmem:[#allocation2] sm:$0xff]
        %vm386 = vcmask 261120
        %v387 = vsel %vm386, %v385, 0.0
        %388 = vadd.xlane.f32.xlu0 %v387
        %v389 = vpop.xlane.xlu0 %388
        %v390 = vrcp.pop 32.0
        %v391 = vmul.f32 %v389, %v390
        %v392 = vmul.f32 %v385, %v385
        %v393 = vsel %vm386, %v392, 0.0
        %394 = vadd.xlane.f32.xlu0 %v393
        %v395 = vpop.xlane.xlu0 %394
        %v396 = vmul.f32 %v395, %v390
        %v397 = vmul.f32 %v391, %v391
        %v398 = vsub.f32 %v396, %v397
        %v399 = vmax.f32 %v398, 0.0
        %v400 = vsub.f32 %v385, %v391
        %v401 = vadd.f32 %v399, 1e-05
        %v402 = vrsqrt.pop %v401
        %v403 = vmul.f32 %v400, %v402
        %v404 = vld [vmem:[%s5] sm:$0x1]
        %v406 = vlaneseq
        %v407 = vshrl.u32 %v406, 7
        %v408 = vsub.s32 0, %v407
        %v409 = vrot.slane %v404, %v408
        %v411 = vmul.f32 %v403, %v409
        %v412 = vld [vmem:[%s6] sm:$0x1]
        %v414 = vlaneseq
        %v415 = vshrl.u32 %v414, 7
        %v416 = vsub.s32 0, %v415
        %v417 = vrot.slane %v412, %v416
        %v419 = vadd.f32 %v411, %v417
        %v420 = vld [vmem:[%s245] sm:$0xff]
        %v421 = vadd.f32 %v419, %v420
        %422 = vst.msk [vmem:[%s241] sm:$0xff] %vm386, %v421
        %s423 = sand.u32 %s163, 1
        %s424 = scalar_lea.sflag [#allocation7], %s423
        %s425 = sand.u32 %s163, 1
        %s426 = smul.addr %s425, 8
        %s427 = scalar_lea.vmem [#allocation6], %s426
        // Predicated region
        $region41: #{tpu_custom_call.1} parent=39 // pred_check
          %p428 = pneg %p173
        $region42: #{tpu_custom_call.1} parent=39 // pred_check_branch
          %430 = sbr.rel (%p428) target = $region44
        $region43: #{tpu_custom_call.1} parent=39 // pred_region
          %s432 = ssub.s32 128, 128
          %433 = vsyncadd %s424, %s432
          %s434 = sadd.s32 %s36, %s35
          %s435 = smul.addr %s434, 128
          %s436 = scalar_lea.hbm %s7, %s435
          %s438 = sshll.u32 %s427, 4
          %s439 = int_to_ptr.vmem [resolvable:$true] %s438
          %441 = dma.vmem_to_hbm [thread:$0]  %s439, 128, %s436, %s424
        $region44: #{tpu_custom_call.1} parent=39 // pred_fallthru
          _
      $region40: #{tpu_custom_call.1} parent=5 // pred_fallthru
        _
      %p442 = scmp.le.s32.totalorder 2, %s26
      // Predicated region
      $region45: #{tpu_custom_call.1} parent=5 // pred_check
        %p443 = pneg %p442
      $region46: #{tpu_custom_call.1} parent=5 // pred_check_branch
        %445 = sbr.rel (%p443) target = $region48
      $region47: #{tpu_custom_call.1} parent=5 // pred_region
        %s446 = ssub.s32 %s26, 2
        // Predicated region
        $region49: #{tpu_custom_call.1} parent=47 // pred_check
          %p447 = pneg %p179
        $region50: #{tpu_custom_call.1} parent=47 // pred_check_branch
          %449 = sbr.rel (%p447) target = $region52
        $region51: #{tpu_custom_call.1} parent=47 // pred_region
          %s450 = sand.u32 %s164, 1
          %s451 = scalar_lea.sflag [#allocation7], %s450
          %s452 = sand.u32 %s164, 1
          %s453 = smul.addr %s452, 8
          %s454 = scalar_lea.vmem [#allocation6], %s453
          %455 = dma.done %s451, 128
        $region52: #{tpu_custom_call.1} parent=47 // pred_fallthru
          _
      $region48: #{tpu_custom_call.1} parent=5 // pred_fallthru
        _
    $region6: #{tpu_custom_call.1} parent=1 // loop_footer
      %s30 = sadd.s32 1, %s26
    $region7: #{tpu_custom_call.1} parent=1 // loop_footer_branch
      %25 = sbr.rel target = $region3
    $region8: #{tpu_custom_call.1} parent=1 // loop_exit
      _
    %456 = vsyncpa [#allocation7], 1
    %s457 = scalar_lea.sflag [#allocation7], 1
    %458 = vsyncpa %s457, 1

</llo_original>
